<compile_context>
chip_gen: v5e
topology: v5e:2x2
jax: 0.10.0
libtpu: 0.0.40
codegen_flags: <defaults>
</compile_context>

<pallas_src>
import jax
import jax.numpy as jnp
from jax.experimental import pallas as pl
from jax.experimental.pallas import tpu as pltpu


def _round_up(x, m):
    return ((x + m - 1) // m) * m


def _noisy_linear_kernel(x_ref, w_ref, eps_p_ref, eps_q_ref, mu_b_ref,
                         sig_b_ref, o_ref, acc_ref):
    j = pl.program_id(1)
    k = pl.program_id(2)
    tk = x_ref.shape[1]
    tn = o_ref.shape[1]

    @pl.when(k == 0)
    def _():
        acc_ref[...] = jnp.zeros_like(acc_ref)

    # Resident (1, INp)/(1, OUTp) rows; slice the current (lane-aligned) tile.
    k_off = pl.multiple_of(k * tk, 128)
    j_off = pl.multiple_of(j * tn, 128)
    eps_p = eps_p_ref[:, pl.ds(k_off, tk)]        # bf16 [1, tk]
    eps_q = eps_q_ref[:, pl.ds(j_off, tn)]        # f32  [1, tn]

    x = x_ref[...]                                 # bf16 [tm, tk]
    xe = x * eps_p                                 # bf16 [tm, tk]

    # Two bf16 MXU matmuls (f32 accumulation) against the stacked weight tile:
    # w_ref[0] = mu_W^T tile, w_ref[1] = sigma_W^T tile  (one DMA for both).
    y_mu = jnp.dot(x, w_ref[0], preferred_element_type=jnp.float32)
    y_sig = jnp.dot(xe, w_ref[1], preferred_element_type=jnp.float32)

    # eps_q distributes over the K sum -> apply per-step on the small [tm, tn].
    acc_ref[...] += y_mu + y_sig * eps_q

    @pl.when(k == pl.num_programs(2) - 1)
    def _():
        bias = mu_b_ref[:, pl.ds(j_off, tn)] + sig_b_ref[:, pl.ds(j_off, tn)] * eps_q
        o_ref[...] = (acc_ref[...] + bias).astype(o_ref.dtype)


def prepare_noisy_linear(mu_W, sigma_W, mu_bias, sigma_bias, eps_p, eps_q,
                         *, tile_n=1024, tile_k=1024):
    """One-time canonical layout for the kernel (cache across forward calls).

    Transposes the [OUT, IN] weights to lane-dense [IN, OUT], casts the MXU
    operands to bf16, stacks mu/sigma into one array so a single DMA per grid
    step streams both, and zero-pads everything to the tile grid.
    """
    OUT, IN = mu_W.shape

    INa = _round_up(IN, 128)
    OUTa = _round_up(OUT, 128)

    tk = min(tile_k, INa)
    tn = min(tile_n, OUTa)
    # v7x megacore: ensure the parallel OUT axis has >= 2 tiles when possible
    # so both TensorCores get work (no effect on single-TC v5e/v6e).
    if OUTa // tn < 2 and OUTa >= 2 * 128:
        tn = _round_up((OUTa + 1) // 2, 128)

    INp = _round_up(IN, tk)
    OUTp = _round_up(OUT, tn)

    def pad2(a, rows, cols):
        pr, pc = rows - a.shape[0], cols - a.shape[1]
        if pr or pc:
            a = jnp.pad(a, ((0, pr), (0, pc)))
        return a

    bf16, f32 = jnp.bfloat16, jnp.float32
    # [2, INp, OUTp] bf16: index 0 -> mu_W^T, index 1 -> sigma_W^T.
    w_stack = jnp.stack([
        pad2(jnp.transpose(mu_W.astype(bf16)), INp, OUTp),
        pad2(jnp.transpose(sigma_W.astype(bf16)), INp, OUTp),
    ])

    eps_p2 = pad2(eps_p.astype(bf16).reshape(1, IN), 1, INp)
    eps_q2 = pad2(eps_q.astype(f32).reshape(1, OUT), 1, OUTp)
    mu_b2 = pad2(mu_bias.astype(f32).reshape(1, OUT), 1, OUTp)
    sig_b2 = pad2(sigma_bias.astype(f32).reshape(1, OUT), 1, OUTp)

    meta = dict(IN=IN, OUT=OUT, INp=INp, OUTp=OUTp, tn=tn, tk=tk)
    return (w_stack, eps_p2, eps_q2, mu_b2, sig_b2, meta)


def noisy_linear_forward(x, prepared, *, tile_m=512):
    """Training-mode NoisyLinear forward.  x: [B, IN] f32 -> [B, OUT] f32."""
    w_stack, eps_p2, eps_q2, mu_b2, sig_b2, meta = prepared
    IN, OUT = meta["IN"], meta["OUT"]
    INp, OUTp = meta["INp"], meta["OUTp"]
    tn, tk = meta["tn"], meta["tk"]

    B = x.shape[0]
    # tm: multiple of 16 (bf16 sublane packing); cover the whole padded batch
    # when it fits so the weight matrices are streamed from HBM exactly once.
    tm = min(_round_up(tile_m, 16), _round_up(B, 16))
    Bp = _round_up(B, tm)

    xp = x.astype(jnp.bfloat16)
    pr, pc = Bp - B, INp - IN
    if pr or pc:
        xp = jnp.pad(xp, ((0, pr), (0, pc)))

    grid = (Bp // tm, OUTp // tn, INp // tk)

    out = pl.pallas_call(
        _noisy_linear_kernel,
        out_shape=jax.ShapeDtypeStruct((Bp, OUTp), jnp.float32),
        grid_spec=pltpu.PrefetchScalarGridSpec(
            num_scalar_prefetch=0,
            grid=grid,
            in_specs=[
                pl.BlockSpec((tm, tk), lambda i, j, k: (i, k)),        # x (bf16)
                pl.BlockSpec((2, tk, tn), lambda i, j, k: (0, k, j)),  # mu/sigma W^T (bf16)
                pl.BlockSpec((1, INp), lambda i, j, k: (0, 0)),        # eps_p (resident)
                pl.BlockSpec((1, OUTp), lambda i, j, k: (0, 0)),       # eps_q (resident)
                pl.BlockSpec((1, OUTp), lambda i, j, k: (0, 0)),       # mu_bias (resident)
                pl.BlockSpec((1, OUTp), lambda i, j, k: (0, 0)),       # sigma_bias (resident)
            ],
            out_specs=pl.BlockSpec((tm, tn), lambda i, j, k: (i, j)),
            scratch_shapes=[pltpu.VMEM((tm, tn), jnp.float32)],
        ),
        compiler_params=pltpu.CompilerParams(
            dimension_semantics=("parallel", "parallel", "arbitrary"),
            vmem_limit_bytes=48 * 1024 * 1024,
        ),
    )(xp, w_stack, eps_p2, eps_q2, mu_b2, sig_b2)

    return out[:B, :OUT]


def make_params(key, in_features, out_features, sigma=0.5):
    """Deterministic parameter / noise-buffer init matching
    NoisyLinear.reset() + NoisyLinear.sample()."""
    k_mu_w, k_mu_b, k_ep, k_eq = jax.random.split(key, 4)
    bound = 1.0 / jnp.sqrt(jnp.float32(in_features))

    mu_W = jax.random.uniform(k_mu_w, (out_features, in_features),
                              minval=-bound, maxval=bound, dtype=jnp.float32)
    mu_bias = jax.random.uniform(k_mu_b, (out_features,),
                                 minval=-bound, maxval=bound, dtype=jnp.float32)
    sigma_W = jnp.full((out_features, in_features),
                       sigma / jnp.sqrt(jnp.float32(in_features)), jnp.float32)
    sigma_bias = jnp.full((out_features,),
                          sigma / jnp.sqrt(jnp.float32(out_features)), jnp.float32)

    # f(x) = sign(normal) * sqrt(|normal|)
    def f(k, shape):
        z = jax.random.normal(k, shape, dtype=jnp.float32)
        return jnp.sign(z) * jnp.sqrt(jnp.abs(z))

    eps_p = f(k_ep, (in_features,))
    eps_q = f(k_eq, (out_features,))
    return mu_W, sigma_W, mu_bias, sigma_bias, eps_p, eps_q


def reference_forward(x, mu_W, sigma_W, mu_bias, sigma_bias, eps_p, eps_q):
    weight = mu_W + sigma_W * jnp.outer(eps_q, eps_p)
    bias = mu_bias + sigma_bias * eps_q
    return x @ weight.T + bias


if __name__ == "__main__":
    key = jax.random.PRNGKey(0)
    keys = jax.random.split(key, 6)

    # bf16 MXU operands with f32 accumulation -> loosen tolerance vs f32 ref.
    ATOL, RTOL = 5e-2, 5e-2

    # Case 1: small, aligned-ish shapes.
    B, IN, OUT = 8, 32, 64
    x = jax.random.normal(keys[0], (B, IN), dtype=jnp.float32)
    params = make_params(keys[1], IN, OUT, sigma=0.5)
    prep = prepare_noisy_linear(*params)          # canonical layout, built once
    y = jax.block_until_ready(noisy_linear_forward(x, prep))
    y_ref = reference_forward(x, *params)
    assert y.shape == (B, OUT)
    assert jnp.allclose(y, y_ref, atol=ATOL, rtol=RTOL), "mismatch vs reference (case 1)"

    # Case 2: ragged shapes exercising the padding path.
    B2, IN2, OUT2 = 5, 50, 70
    x2 = jax.random.normal(keys[2], (B2, IN2), dtype=jnp.float32)
    params2 = make_params(keys[3], IN2, OUT2, sigma=0.5)
    prep2 = prepare_noisy_linear(*params2)
    y2 = jax.block_until_ready(noisy_linear_forward(x2, prep2))
    y2_ref = reference_forward(x2, *params2)
    assert y2.shape == (B2, OUT2)
    assert jnp.allclose(y2, y2_ref, atol=ATOL, rtol=RTOL), "mismatch vs reference (case 2)"

    # Case 3: exercises the multi-j-tile (megacore split) path.
    B3, IN3, OUT3 = 20, 200, 300
    x3 = jax.random.normal(keys[4], (B3, IN3), dtype=jnp.float32)
    params3 = make_params(keys[5], IN3, OUT3, sigma=0.5)
    prep3 = prepare_noisy_linear(*params3)
    y3 = jax.block_until_ready(noisy_linear_forward(x3, prep3))
    y3_ref = reference_forward(x3, *params3)
    assert y3.shape == (B3, OUT3)
    assert jnp.allclose(y3, y3_ref, atol=ATOL, rtol=RTOL), "mismatch vs reference (case 3)"

    print("KERNEL_OK")
</pallas_src>

<mosaic_0001>
module attributes {stable_mosaic.version = 11 : i64} {
  func.func @_noisy_linear_kernel(%arg0: i32, %arg1: i32, %arg2: i32, %arg3: memref<16x128xbf16, #tpu.memory_space<vmem>>, %arg4: memref<2x128x128xbf16, #tpu.memory_space<vmem>>, %arg5: memref<1x128xbf16, #tpu.memory_space<vmem>>, %arg6: memref<1x128xf32, #tpu.memory_space<vmem>>, %arg7: memref<1x128xf32, #tpu.memory_space<vmem>>, %arg8: memref<1x128xf32, #tpu.memory_space<vmem>>, %arg9: memref<16x128xf32, #tpu.memory_space<vmem>>, %arg10: memref<16x128xf32, #tpu.memory_space<vmem>>) attributes {dimension_semantics = [#tpu.dimension_semantics<parallel>, #tpu.dimension_semantics<parallel>, #tpu.dimension_semantics<arbitrary>], iteration_bounds = array<i64: 1, 1, 1>, scalar_prefetch = 0 : i64, scratch_operands = 1 : i64, tpu.core_type = #tpu.core_type<tc>, window_params = [{transform_indices = @transform_0, window_bounds = array<i64: 16, 128>}, {transform_indices = @transform_1, window_bounds = array<i64: 2, 128, 128>}, {pipeline_mode = #tpu.pipeline_mode<synchronous>, transform_indices = @transform_2, window_bounds = array<i64: 1, 128>}, {pipeline_mode = #tpu.pipeline_mode<synchronous>, transform_indices = @transform_3, window_bounds = array<i64: 1, 128>}, {pipeline_mode = #tpu.pipeline_mode<synchronous>, transform_indices = @transform_4, window_bounds = array<i64: 1, 128>}, {pipeline_mode = #tpu.pipeline_mode<synchronous>, transform_indices = @transform_5, window_bounds = array<i64: 1, 128>}, {transform_indices = @transform_6, window_bounds = array<i64: 16, 128>}]} {
    %c0_i32 = arith.constant 0 : i32
    %0 = arith.cmpi eq, %arg2, %c0_i32 : i32
    %1 = arith.extui %0 : i1 to i32
    %c0_i32_0 = arith.constant 0 : i32
    %2 = arith.cmpi ne, %1, %c0_i32_0 : i32
    scf.if %2 {
      %cst_17 = arith.constant 0.000000e+00 : f32
      %29 = vector.broadcast %cst_17 : f32 to vector<16x128xf32>
      %c0_18 = arith.constant 0 : index
      %c0_19 = arith.constant 0 : index
      %30 = vector.load %arg10[%c0_18, %c0_19] : memref<16x128xf32, #tpu.memory_space<vmem>>, vector<16x128xf32>
      tpu.vector_store %arg10[%c0_18, %c0_19], %29 {strides = array<i32>} : memref<16x128xf32, #tpu.memory_space<vmem>>, vector<16x128xf32>,
    } else {
    }
    %c128_i32 = arith.constant 128 : i32
    %3 = arith.muli %arg2, %c128_i32 : i32
    %4 = tpu.assume_multiple %3, 128 : i32
    %c128_i32_1 = arith.constant 128 : i32
    %5 = arith.muli %arg1, %c128_i32_1 : i32
    %6 = tpu.assume_multiple %5, 128 : i32
    %c0 = arith.constant 0 : index
    %7 = arith.index_cast %4 : i32 to index
    %8 = vector.load %arg5[%c0, %7] : memref<1x128xbf16, #tpu.memory_space<vmem>>, vector<1x128xbf16>
    %c0_2 = arith.constant 0 : index
    %9 = arith.index_cast %6 : i32 to index
    %10 = vector.load %arg6[%c0_2, %9] : memref<1x128xf32, #tpu.memory_space<vmem>>, vector<1x128xf32>
    %c0_3 = arith.constant 0 : index
    %c0_4 = arith.constant 0 : index
    %11 = vector.load %arg3[%c0_3, %c0_4] : memref<16x128xbf16, #tpu.memory_space<vmem>>, vector<16x128xbf16>
    %12 = vector.broadcast %8 : vector<1x128xbf16> to vector<16x128xbf16>
    %13 = arith.mulf %11, %12 : vector<16x128xbf16>
    %c0_5 = arith.constant 0 : index
    %c0_6 = arith.constant 0 : index
    %c0_7 = arith.constant 0 : index
    %14 = vector.load %arg4[%c0_5, %c0_6, %c0_7] : memref<2x128x128xbf16, #tpu.memory_space<vmem>>, vector<1x128x128xbf16>
    %15 = vector.shape_cast %14 : vector<1x128x128xbf16> to vector<128x128xbf16>
    %cst = arith.constant dense<0.000000e+00> : vector<16x128xf32>
    %16 = tpu.matmul %11, %15, %cst {dimension_numbers = #tpu.dot_dimension_numbers<[1], [0], [0], [1], [0, 0, 1, 1], [], []>} : vector<16x128xbf16>, vector<128x128xbf16>, vector<16x128xf32> -> vector<16x128xf32>
    %c1 = arith.constant 1 : index
    %c0_8 = arith.constant 0 : index
    %c0_9 = arith.constant 0 : index
    %17 = vector.load %arg4[%c1, %c0_8, %c0_9] : memref<2x128x128xbf16, #tpu.memory_space<vmem>>, vector<1x128x128xbf16>
    %18 = vector.shape_cast %17 : vector<1x128x128xbf16> to vector<128x128xbf16>
    %cst_10 = arith.constant dense<0.000000e+00> : vector<16x128xf32>
    %19 = tpu.matmul %13, %18, %cst_10 {dimension_numbers = #tpu.dot_dimension_numbers<[1], [0], [0], [1], [0, 0, 1, 1], [], []>} : vector<16x128xbf16>, vector<128x128xbf16>, vector<16x128xf32> -> vector<16x128xf32>
    %c0_11 = arith.constant 0 : index
    %c0_12 = arith.constant 0 : index
    %20 = vector.load %arg10[%c0_11, %c0_12] : memref<16x128xf32, #tpu.memory_space<vmem>>, vector<16x128xf32>
    %21 = vector.broadcast %10 : vector<1x128xf32> to vector<16x128xf32>
    %22 = arith.mulf %19, %21 : vector<16x128xf32>
    %23 = arith.addf %16, %22 : vector<16x128xf32>
    %24 = arith.addf %20, %23 : vector<16x128xf32>
    %c0_13 = arith.constant 0 : index
    %c0_14 = arith.constant 0 : index
    %25 = vector.load %arg10[%c0_13, %c0_14] : memref<16x128xf32, #tpu.memory_space<vmem>>, vector<16x128xf32>
    tpu.vector_store %arg10[%c0_13, %c0_14], %24 {strides = array<i32>} : memref<16x128xf32, #tpu.memory_space<vmem>>, vector<16x128xf32>,
    %c0_i32_15 = arith.constant 0 : i32
    %26 = arith.cmpi eq, %arg2, %c0_i32_15 : i32
    %27 = arith.extui %26 : i1 to i32
    %c0_i32_16 = arith.constant 0 : i32
    %28 = arith.cmpi ne, %27, %c0_i32_16 : i32
    scf.if %28 {
      %c0_17 = arith.constant 0 : index
      %29 = arith.index_cast %6 : i32 to index
      %30 = vector.load %arg7[%c0_17, %29] : memref<1x128xf32, #tpu.memory_space<vmem>>, vector<1x128xf32>
      %c0_18 = arith.constant 0 : index
      %31 = arith.index_cast %6 : i32 to index
      %32 = vector.load %arg8[%c0_18, %31] : memref<1x128xf32, #tpu.memory_space<vmem>>, vector<1x128xf32>
      %33 = arith.mulf %32, %10 : vector<1x128xf32>
      %34 = arith.addf %30, %33 : vector<1x128xf32>
      %c0_19 = arith.constant 0 : index
      %c0_20 = arith.constant 0 : index
      %35 = vector.load %arg10[%c0_19, %c0_20] : memref<16x128xf32, #tpu.memory_space<vmem>>, vector<16x128xf32>
      %36 = vector.broadcast %34 : vector<1x128xf32> to vector<16x128xf32>
      %37 = arith.addf %35, %36 : vector<16x128xf32>
      %c0_21 = arith.constant 0 : index
      %c0_22 = arith.constant 0 : index
      %38 = vector.load %arg9[%c0_21, %c0_22] : memref<16x128xf32, #tpu.memory_space<vmem>>, vector<16x128xf32>
      tpu.vector_store %arg9[%c0_21, %c0_22], %37 {strides = array<i32>} : memref<16x128xf32, #tpu.memory_space<vmem>>, vector<16x128xf32>,
    } else {
    }
    return
  }
  func.func @transform_0(%arg0: i32, %arg1: i32, %arg2: i32) -> (i32, i32) {
    %c0_i32 = arith.constant 0 : i32
    return %arg0, %arg2 : i32, i32
  }
  func.func @transform_1(%arg0: i32, %arg1: i32, %arg2: i32) -> (i32, i32, i32) {
    %c0_i32 = arith.constant 0 : i32
    %c0_i32_0 = arith.constant 0 : i32
    return %c0_i32, %arg2, %arg1 : i32, i32, i32
  }
  func.func @transform_2(%arg0: i32, %arg1: i32, %arg2: i32) -> (i32, i32) {
    %c0_i32 = arith.constant 0 : i32
    %c0_i32_0 = arith.constant 0 : i32
    %c0_i32_1 = arith.constant 0 : i32
    return %c0_i32, %c0_i32_0 : i32, i32
  }
  func.func @transform_3(%arg0: i32, %arg1: i32, %arg2: i32) -> (i32, i32) {
    %c0_i32 = arith.constant 0 : i32
    %c0_i32_0 = arith.constant 0 : i32
    %c0_i32_1 = arith.constant 0 : i32
    return %c0_i32, %c0_i32_0 : i32, i32
  }
  func.func @transform_4(%arg0: i32, %arg1: i32, %arg2: i32) -> (i32, i32) {
    %c0_i32 = arith.constant 0 : i32
    %c0_i32_0 = arith.constant 0 : i32
    %c0_i32_1 = arith.constant 0 : i32
    return %c0_i32, %c0_i32_0 : i32, i32
  }
  func.func @transform_5(%arg0: i32, %arg1: i32, %arg2: i32) -> (i32, i32) {
    %c0_i32 = arith.constant 0 : i32
    %c0_i32_0 = arith.constant 0 : i32
    %c0_i32_1 = arith.constant 0 : i32
    return %c0_i32, %c0_i32_0 : i32, i32
  }
  func.func @transform_6(%arg0: i32, %arg1: i32, %arg2: i32) -> (i32, i32) {
    %c0_i32 = arith.constant 0 : i32
    return %arg0, %arg1 : i32, i32
  }
}

</mosaic_0001>

<llo_original>
// kernel: tpu_custom_call.1
$region0: #{tpu_custom_call.1}
  #allocation0 [shape = 'u32[]', space=smem, size = 0x4, offset = 0x4, fixed_abs, tag = 'smem constant byte address 0x4 - core index']
  #allocation1 [shape = 'u32[72,128]{1,0:T(1,128)}', space=vmem, size = 0x9000, scoped, tag = 'internal scratch']
  #allocation2 [shape = 'f32[16,128]{1,0:T(8,128)}', space=vmem, size = 0x2000, scoped, tag = 'scratch operand']
  %s0 = inlined_call_operand.hbm [shape: bf16[16,128], index: 0, kind: input, shape index: {}]
  %s1 = inlined_call_operand.hbm [shape: bf16[2,128,128], index: 1, kind: input, shape index: {}]
  %s2 = inlined_call_operand.vmem [shape: bf16[1,128], index: 2, kind: input, shape index: {}]
  %s3 = inlined_call_operand.vmem [shape: f32[1,128], index: 3, kind: input, shape index: {}]
  %s4 = inlined_call_operand.vmem [shape: f32[1,128], index: 4, kind: input, shape index: {}]
  %s5 = inlined_call_operand.vmem [shape: f32[1,128], index: 5, kind: input, shape index: {}]
  %s6 = inlined_call_operand.hbm [shape: f32[16,128], index: 6, kind: output, shape index: {}]
  %s7 = sld [smem:[#allocation0]]
  $region50: #{tpu_custom_call.1} parent=0
    _
  %s9 = ssub.s32 1, %s7
  %s10 = scalar_select 0, %s9, %s7
  $region1: #{tpu_custom_call.1} parent=0
    #allocation3 [shape = 'u8[4096]{0}', space=vmem, size = 0x1000, scoped, tag = 'input window, operand 0, single buffered']
    #allocation4 [shape = 's32[1]{0}', space=sflag, size = 0x4, scoped, tag = 'scoped memory for tpu_custom_call.1']
    #allocation5 [shape = 's32[1]{0}', space=sflag, size = 0x4, scoped, tag = 'scoped memory for tpu_custom_call.1']
    #allocation6 [shape = 'u8[65536]{0}', space=vmem, size = 0x10000, scoped, tag = 'input window, operand 1, single buffered']
    #allocation7 [shape = 's32[1]{0}', space=sflag, size = 0x4, scoped, tag = 'scoped memory for tpu_custom_call.1']
    #allocation8 [shape = 'u8[8192]{0}', space=vmem, size = 0x2000, scoped, tag = 'output window, operand 0, single buffered']
    %11 = vsyncpa [#allocation4], 0
    %12 = vsyncpa [#allocation7], 0
    %13 = vsyncpa [#allocation5], 0
    // Predicated region
    $region2: #{tpu_custom_call.1} parent=1 // pred_check
      _
    $region3: #{tpu_custom_call.1} parent=1 // pred_check_branch
      %15 = sbr.rel (0) target = $region5
    $region4: #{tpu_custom_call.1} parent=1 // pred_region
      %17 = vsyncadd [#allocation4], 0
      %s18 = sshll.u32 %s0, 4
      %s19 = int_to_ptr.hbm [resolvable:$true] %s18
      %s20 = sshll.u32 [#allocation3], 4
      %s21 = int_to_ptr.vmem [resolvable:$true] %s20
      %26 = dma.hbm_to_vmem [thread:$0]  %s19, 128, %s21, [#allocation4], 64, 64, 4
    $region5: #{tpu_custom_call.1} parent=1 // pred_fallthru
      _
    // Predicated region
    $region6: #{tpu_custom_call.1} parent=1 // pred_check
      _
    $region7: #{tpu_custom_call.1} parent=1 // pred_check_branch
      %28 = sbr.rel (0) target = $region9
    $region8: #{tpu_custom_call.1} parent=1 // pred_region
      %30 = vsyncadd [#allocation7], 0
      %s31 = sshll.u32 %s1, 4
      %s32 = int_to_ptr.hbm [resolvable:$true] %s31
      %s33 = sshll.u32 [#allocation6], 4
      %s34 = int_to_ptr.vmem [resolvable:$true] %s33
      %39 = dma.hbm_to_vmem [thread:$0]  %s32, 2048, %s34, [#allocation7], 64, 64, 4
    $region9: #{tpu_custom_call.1} parent=1 // pred_fallthru
      _
    // Predicated region
    $region10: #{tpu_custom_call.1} parent=1 // pred_check
      _
    $region11: #{tpu_custom_call.1} parent=1 // pred_check_branch
      %41 = sbr.rel (0) target = $region13
    $region12: #{tpu_custom_call.1} parent=1 // pred_region
      _
    $region13: #{tpu_custom_call.1} parent=1 // pred_fallthru
      _
    // Predicated region
    $region14: #{tpu_custom_call.1} parent=1 // pred_check
      _
    $region15: #{tpu_custom_call.1} parent=1 // pred_check_branch
      %43 = sbr.rel (0) target = $region17
    $region16: #{tpu_custom_call.1} parent=1 // pred_region
      _
    $region17: #{tpu_custom_call.1} parent=1 // pred_fallthru
      _
    // Predicated region
    $region18: #{tpu_custom_call.1} parent=1 // pred_check
      _
    $region19: #{tpu_custom_call.1} parent=1 // pred_check_branch
      %45 = sbr.rel (0) target = $region21
    $region20: #{tpu_custom_call.1} parent=1 // pred_region
      _
    $region21: #{tpu_custom_call.1} parent=1 // pred_fallthru
      _
    // Predicated region
    $region22: #{tpu_custom_call.1} parent=1 // pred_check
      _
    $region23: #{tpu_custom_call.1} parent=1 // pred_check_branch
      %47 = sbr.rel (0) target = $region25
    $region24: #{tpu_custom_call.1} parent=1 // pred_region
      _
    $region25: #{tpu_custom_call.1} parent=1 // pred_fallthru
      _
    // Predicated region
    $region26: #{tpu_custom_call.1} parent=1 // pred_check
      _
    $region27: #{tpu_custom_call.1} parent=1 // pred_check_branch
      %49 = sbr.rel (0) target = $region29
    $region28: #{tpu_custom_call.1} parent=1 // pred_region
      %51 = dma.done [#allocation4], 128
    $region29: #{tpu_custom_call.1} parent=1 // pred_fallthru
      _
    // Predicated region
    $region30: #{tpu_custom_call.1} parent=1 // pred_check
      _
    $region31: #{tpu_custom_call.1} parent=1 // pred_check_branch
      %53 = sbr.rel (0) target = $region33
    $region32: #{tpu_custom_call.1} parent=1 // pred_region
      %55 = dma.done [#allocation7], 2048
    $region33: #{tpu_custom_call.1} parent=1 // pred_fallthru
      _
    %p56 = scmp.eq.s32.totalorder 0, 0
    // Predicated region
    $region34: #{tpu_custom_call.1} parent=1 // pred_check
      %p57 = pneg %p56
    $region35: #{tpu_custom_call.1} parent=1 // pred_check_branch
      %59 = sbr.rel (%p57) target = $region37
    $region36: #{tpu_custom_call.1} parent=1 // pred_region
      %60 = vst [vmem:[#allocation2] sm:$0xff] 0.0
      %61 = vst [vmem:[#allocation2 + $0x8] sm:$0xff] 0.0
    $region37: #{tpu_custom_call.1} parent=1 // pred_fallthru
      _
    %s62 = smul.u32 0, 128
    %s63 = smul.u32 0, 128
    %s64 = sshra.s32 %s62, 7
    %s65 = sand.u32 %s62, 127
    %s66 = scalar_lea.vmem %s2, %s64
    %v67 = vld [vmem:[%s66] sm:$0x1]
    %s68 = sshra.s32 %s63, 7
    %s69 = sand.u32 %s63, 127
    %s70 = scalar_lea.vmem %s3, %s68
    %v71 = vld [vmem:[%s70] sm:$0x1]
    %v72 = vld [vmem:[#allocation3] sm:$0xf]
    %v73 = vld [vmem:[#allocation3 + $0x4] sm:$0xf]
    %v75 = vpack.i.b16 %v67, %v67
    %v77 = vperm.slane %v75, 0
    %v78 = vunpack.c.l.bf16 %v72
    %v79 = vunpack.c.l.bf16 %v73
    %v80 = vunpack.c.l.bf16 %v77
    %v81 = vmul.f32 %v78, %v80
    %v82 = vmul.f32 %v79, %v80
    %v83 = vpack.c.bf16 %v82, %v81
    %v84 = vld [vmem:[#allocation6] sm:$0xf]
    %v85 = vld [vmem:[#allocation6 + $0x4] sm:$0xf]
    %v86 = vld [vmem:[#allocation6 + $0x8] sm:$0xf]
    %v87 = vld [vmem:[#allocation6 + $0xc] sm:$0xf]
    %v88 = vld [vmem:[#allocation6 + $0x10] sm:$0xf]
    %v89 = vld [vmem:[#allocation6 + $0x14] sm:$0xf]
    %v90 = vld [vmem:[#allocation6 + $0x18] sm:$0xf]
    %v91 = vld [vmem:[#allocation6 + $0x1c] sm:$0xf]
    %v92 = vld [vmem:[#allocation6 + $0x20] sm:$0xf]
    %v93 = vld [vmem:[#allocation6 + $0x24] sm:$0xf]
    %v94 = vld [vmem:[#allocation6 + $0x28] sm:$0xf]
    %v95 = vld [vmem:[#allocation6 + $0x2c] sm:$0xf]
    %v96 = vld [vmem:[#allocation6 + $0x30] sm:$0xf]
    %v97 = vld [vmem:[#allocation6 + $0x34] sm:$0xf]
    %v98 = vld [vmem:[#allocation6 + $0x38] sm:$0xf]
    %v99 = vld [vmem:[#allocation6 + $0x3c] sm:$0xf]
    %s100 = scalar_lea.vmem [#allocation6], 64
    %v101 = vld [vmem:[%s100] sm:$0xf]
    %v102 = vld [vmem:[%s100 + $0x4] sm:$0xf]
    %v103 = vld [vmem:[%s100 + $0x8] sm:$0xf]
    %v104 = vld [vmem:[%s100 + $0xc] sm:$0xf]
    %v105 = vld [vmem:[%s100 + $0x10] sm:$0xf]
    %v106 = vld [vmem:[%s100 + $0x14] sm:$0xf]
    %v107 = vld [vmem:[%s100 + $0x18] sm:$0xf]
    %v108 = vld [vmem:[%s100 + $0x1c] sm:$0xf]
    %v109 = vld [vmem:[%s100 + $0x20] sm:$0xf]
    %v110 = vld [vmem:[%s100 + $0x24] sm:$0xf]
    %v111 = vld [vmem:[%s100 + $0x28] sm:$0xf]
    %v112 = vld [vmem:[%s100 + $0x2c] sm:$0xf]
    %v113 = vld [vmem:[%s100 + $0x30] sm:$0xf]
    %v114 = vld [vmem:[%s100 + $0x34] sm:$0xf]
    %v115 = vld [vmem:[%s100 + $0x38] sm:$0xf]
    %v116 = vld [vmem:[%s100 + $0x3c] sm:$0xf]
    %v133 = vunpack.c.l.b16 %v101
    %v134 = vunpack.c.l.b16 %v102
    %v135 = vunpack.c.l.b16 %v103
    %v136 = vunpack.c.l.b16 %v104
    %v137 = vunpack.c.l.b16 %v105
    %v138 = vunpack.c.l.b16 %v106
    %v139 = vunpack.c.l.b16 %v107
    %v140 = vunpack.c.l.b16 %v108
    %v141 = vunpack.c.l.b16 %v109
    %v142 = vunpack.c.l.b16 %v110
    %v143 = vunpack.c.l.b16 %v111
    %v144 = vunpack.c.l.b16 %v112
    %v145 = vunpack.c.l.b16 %v113
    %v146 = vunpack.c.l.b16 %v114
    %v147 = vunpack.c.l.b16 %v115
    %v148 = vunpack.c.l.b16 %v116
    %v149 = vpack.c.b16 %v134, %v133
    %v150 = vpack.c.b16 %v136, %v135
    %v151 = vpack.c.b16 %v138, %v137
    %v152 = vpack.c.b16 %v140, %v139
    %v153 = vpack.c.b16 %v142, %v141
    %v154 = vpack.c.b16 %v144, %v143
    %v155 = vpack.c.b16 %v146, %v145
    %v156 = vpack.c.b16 %v148, %v147
    %165 = vmatpush.bf16.msra.mxu0 %v156
    %166 = vmatpush.bf16.msra.mxu0 %v155
    %167 = vmatpush.bf16.msra.mxu0 %v154
    %168 = vmatpush.bf16.msra.mxu0 %v153
    %169 = vmatpush.bf16.msra.mxu0 %v152
    %170 = vmatpush.bf16.msra.mxu0 %v151
    %171 = vmatpush.bf16.msra.mxu0 %v150
    %172 = vmatpush.bf16.msra.mxu0 %v149
    %173 = vmatmul.bf16.gmra.mxu0 %v83
    %v174 = vpop.f32.mrf.mxu0
    %v175 = vadd.f32 0.0, %v174
    %v176 = vpop.f32.mrf.mxu0
    %v177 = vadd.f32 0.0, %v176
    %178 = vdwg.mxu0
    %v179 = vld [vmem:[#allocation2] sm:$0xff]
    %v180 = vld [vmem:[#allocation2 + $0x8] sm:$0xff]
    %v182 = vperm.slane %v71, 0
    %v184 = vmul.f32 %v175, %v182
    %v185 = vmul.f32 %v177, %v182
    %v188 = vunpack.c.l.b16 %v72
    %v189 = vunpack.c.l.b16 %v73
    %v190 = vpack.c.b16 %v189, %v188
    %v208 = vunpack.c.l.b16 %v84
    %v209 = vunpack.c.l.b16 %v85
    %v210 = vunpack.c.l.b16 %v86
    %v211 = vunpack.c.l.b16 %v87
    %v212 = vunpack.c.l.b16 %v88
    %v213 = vunpack.c.l.b16 %v89
    %v214 = vunpack.c.l.b16 %v90
    %v215 = vunpack.c.l.b16 %v91
    %v216 = vunpack.c.l.b16 %v92
    %v217 = vunpack.c.l.b16 %v93
    %v218 = vunpack.c.l.b16 %v94
    %v219 = vunpack.c.l.b16 %v95
    %v220 = vunpack.c.l.b16 %v96
    %v221 = vunpack.c.l.b16 %v97
    %v222 = vunpack.c.l.b16 %v98
    %v223 = vunpack.c.l.b16 %v99
    %v224 = vpack.c.b16 %v209, %v208
    %v225 = vpack.c.b16 %v211, %v210
    %v226 = vpack.c.b16 %v213, %v212
    %v227 = vpack.c.b16 %v215, %v214
    %v228 = vpack.c.b16 %v217, %v216
    %v229 = vpack.c.b16 %v219, %v218
    %v230 = vpack.c.b16 %v221, %v220
    %v231 = vpack.c.b16 %v223, %v222
    %240 = vmatpush.bf16.msra.mxu0 %v231
    %241 = vmatpush.bf16.msra.mxu0 %v230
    %242 = vmatpush.bf16.msra.mxu0 %v229
    %243 = vmatpush.bf16.msra.mxu0 %v228
    %244 = vmatpush.bf16.msra.mxu0 %v227
    %245 = vmatpush.bf16.msra.mxu0 %v226
    %246 = vmatpush.bf16.msra.mxu0 %v225
    %247 = vmatpush.bf16.msra.mxu0 %v224
    %248 = vmatmul.bf16.gmra.mxu0 %v190
    %v249 = vpop.f32.mrf.mxu0
    %v250 = vadd.f32 %v184, %v249
    %v251 = vpop.f32.mrf.mxu0
    %v252 = vadd.f32 %v185, %v251
    %253 = vdwg.mxu0
    %v254 = vadd.f32 %v179, %v250
    %v255 = vadd.f32 %v180, %v252
    %256 = vst [vmem:[#allocation2] sm:$0xff] %v254
    %257 = vst [vmem:[#allocation2 + $0x8] sm:$0xff] %v255
    // Predicated region
    $region38: #{tpu_custom_call.1} parent=1 // pred_check
      %p258 = pneg %p56
    $region39: #{tpu_custom_call.1} parent=1 // pred_check_branch
      %260 = sbr.rel (%p258) target = $region41
    $region40: #{tpu_custom_call.1} parent=1 // pred_region
      %s261 = scalar_lea.vmem %s4, %s68
      %v262 = vld [vmem:[%s261] sm:$0x1]
      %s263 = scalar_lea.vmem %s5, %s68
      %v264 = vld [vmem:[%s263] sm:$0x1]
      %v265 = vmul.f32 %v264, %v71
      %v266 = vadd.f32 %v262, %v265
      %v267 = vld [vmem:[#allocation2] sm:$0xff]
      %v268 = vld [vmem:[#allocation2 + $0x8] sm:$0xff]
      %v270 = vperm.slane %v266, 0
      %v272 = vadd.f32 %v267, %v270
      %v273 = vadd.f32 %v268, %v270
      %274 = vst [vmem:[#allocation8] sm:$0xff] %v272
      %275 = vst [vmem:[#allocation8 + $0x8] sm:$0xff] %v273
    $region41: #{tpu_custom_call.1} parent=1 // pred_fallthru
      _
    // Predicated region
    $region42: #{tpu_custom_call.1} parent=1 // pred_check
      _
    $region43: #{tpu_custom_call.1} parent=1 // pred_check_branch
      %277 = sbr.rel (0) target = $region45
    $region44: #{tpu_custom_call.1} parent=1 // pred_region
      %279 = vsyncadd [#allocation5], 0
      %s280 = sshll.u32 [#allocation8], 4
      %s281 = int_to_ptr.vmem [resolvable:$true] %s280
      %s282 = sshll.u32 %s6, 4
      %s283 = int_to_ptr.hbm [resolvable:$true] %s282
      %288 = dma.vmem_to_hbm [thread:$0]  %s281, 256, %s283, [#allocation5], 128, 128, 8
    $region45: #{tpu_custom_call.1} parent=1 // pred_fallthru
      _
    // Predicated region
    $region46: #{tpu_custom_call.1} parent=1 // pred_check
      _
    $region47: #{tpu_custom_call.1} parent=1 // pred_check_branch
      %290 = sbr.rel (0) target = $region49
    $region48: #{tpu_custom_call.1} parent=1 // pred_region
      %292 = dma.done [#allocation5], 256
    $region49: #{tpu_custom_call.1} parent=1 // pred_fallthru
      _
    %293 = vsyncpa [#allocation4], 1
    %294 = vsyncpa [#allocation7], 1
    %295 = vsyncpa [#allocation5], 1

</llo_original>
